<compile_context>
chip_gen: v6e
topology: v6e:2x2x1
jax: 0.10.0
libtpu: 0.0.40
codegen_flags: <defaults>
</compile_context>

<pallas_src>
import functools

import jax
import jax.numpy as jnp
from jax import lax
from jax.experimental import pallas as pl
from jax.experimental.pallas import tpu as pltpu

LANES = 128
MAX_BLOCK_ROWS = 8192            # (8192,128) f32 = 4 MiB / input / buffer
VMEM_LIMIT_BYTES = 32 * 1024 * 1024   # 2 inputs x 2 buffers x 4 MiB = 16 MiB + scratch


def _num_tensorcores():
    """2-way 'parallel' split only pays off on multi-TensorCore chips (v7x)."""
    try:
        kind = jax.devices()[0].device_kind.lower()
    except Exception:
        return 1
    return 2 if "v7" in kind else 1


def _boundary_loss_kernel(x_ref, t_ref, out_ref, acc_ref, *,
                          block_rows, steps, steps_per_split, tail_rows,
                          overshoot, ragged):
    # x_ref, t_ref : (block_rows, 128) tiles (native dtypes) of the flat logits / targets
    # out_ref      : (1, 8, 128) f32 per-split partial sums (rows 0..3 used)
    # acc_ref      : (8, 128) f32 VMEM accumulator
    #                row0 = pos count, row1 = neg count,
    #                row2 = sum bce over pos, row3 = sum bce over neg
    i = pl.program_id(1)

    @pl.when(i == 0)
    def _():
        acc_ref[...] = jnp.zeros_like(acc_ref)

    def accumulate(valid_rows):
        x = x_ref[...].astype(jnp.float32)
        t = t_ref[...]
        pos_b = t == 1
        neg_b = t == 0
        if valid_rows < block_rows:
            # Only the genuinely ragged tail block: rows past `valid_rows` are
            # stale VMEM from the edge-partial DMA and could be NaN/Inf.
            r = lax.broadcasted_iota(jnp.int32, (block_rows, LANES), 0)
            valid = r < valid_rows
            x = jnp.where(valid, x, 0.0)          # keeps softplus finite
            pos_b = jnp.logical_and(pos_b, valid)
            neg_b = jnp.logical_and(neg_b, valid)
        pos = pos_b.astype(jnp.float32)
        neg = neg_b.astype(jnp.float32)
        # Stable softplus(x) = max(x,0) + log1p(exp(-|x|)).  For t in {0,1}:
        #   bce(x,t) = softplus(x) - x*t  ->  pos*bce = pos*(sp - x), neg*bce = neg*sp
        sp = jnp.maximum(x, 0.0) + jnp.log1p(jnp.exp(-jnp.abs(x)))
        acc_ref[0:1, :] += jnp.sum(pos, axis=0, keepdims=True)
        acc_ref[1:2, :] += jnp.sum(neg, axis=0, keepdims=True)
        acc_ref[2:3, :] += jnp.sum(pos * (sp - x), axis=0, keepdims=True)
        acc_ref[3:4, :] += jnp.sum(neg * sp, axis=0, keepdims=True)

    if not ragged and not overshoot:
        # Fast path: every block is full and valid; no iota, no selects, no branch.
        accumulate(block_rows)
    else:
        intended = pl.program_id(0) * steps_per_split + i
        if ragged:
            @pl.when(intended < steps - 1)
            def _():
                accumulate(block_rows)

            @pl.when(intended == steps - 1)
            def _():
                accumulate(tail_rows)
            # intended >= steps (clamped duplicate block): contributes nothing.
        else:
            @pl.when(intended < steps)
            def _():
                accumulate(block_rows)

    @pl.when(i == pl.num_programs(1) - 1)
    def _():
        out_ref[0] = acc_ref[...]


def boundary_loss(bd_pre, bd_gt, coeff_bce=20.0):
    """Pallas implementation of BondaryLoss.forward(bd_pre, bd_gt)."""
    n, c, h, w = bd_pre.shape
    total = n * c * h * w  # static

    # The loss is an order-invariant weighted mean, so the PyTorch NCHW->NHWC
    # permute is dropped (numerically identical) and flatten is a free reshape.
    # Inputs keep their native dtype (bf16/f32 logits, int/bool/float targets);
    # the cast happens in-kernel, so no extra HBM pass for upcasting.
    log_p = bd_pre.reshape(-1)
    tgt = bd_gt.reshape(-1)
    assert tgt.shape[0] == total, "target must have n*c*h*w elements"

    rows = total // LANES
    tail = total - rows * LANES   # <128 leftover elements, finished in plain JAX

    if rows == 0:
        pos_num = neg_num = pos_bce = neg_bce = jnp.float32(0.0)
    else:
        if tail:
            # Rare ragged case: one slice copy of the main body (cheaper than pad;
            # common case 128 | total takes the zero-copy branch below).
            x_main = lax.slice(log_p, (0,), (rows * LANES,))
            t_main = lax.slice(tgt, (0,), (rows * LANES,))
        else:
            x_main = log_p
            t_main = tgt
        x2 = x_main.reshape(rows, LANES)
        t2 = t_main.reshape(rows, LANES)

        # Block / grid geometry.
        block_rows = rows if rows <= MAX_BLOCK_ROWS else MAX_BLOCK_ROWS
        steps = -(-rows // block_rows)             # total reduction steps
        nsplit = _num_tensorcores()
        if steps < 2:
            nsplit = 1                             # nothing to split
        sps = -(-steps // nsplit)                  # steps per split
        overshoot = nsplit * sps != steps          # clamped duplicate block exists?
        tail_rows = rows - (steps - 1) * block_rows
        ragged = tail_rows != block_rows           # last real block is partial?

        def in_map(s, i):
            b = s * sps + i
            if overshoot:
                b = jnp.minimum(b, steps - 1)      # never issue an OOB DMA
            return (b, 0)

        kernel = functools.partial(
            _boundary_loss_kernel,
            block_rows=block_rows,
            steps=steps,
            steps_per_split=sps,
            tail_rows=tail_rows,
            overshoot=overshoot,
            ragged=ragged,
        )

        partials = pl.pallas_call(
            kernel,
            out_shape=jax.ShapeDtypeStruct((nsplit, 8, LANES), jnp.float32),
            grid_spec=pltpu.PrefetchScalarGridSpec(
                num_scalar_prefetch=0,
                grid=(nsplit, sps),
                in_specs=[
                    pl.BlockSpec((block_rows, LANES), in_map),
                    pl.BlockSpec((block_rows, LANES), in_map),
                ],
                out_specs=pl.BlockSpec((1, 8, LANES), lambda s, i: (s, 0, 0)),
                scratch_shapes=[pltpu.VMEM((8, LANES), jnp.float32)],
            ),
            compiler_params=pltpu.CompilerParams(
                dimension_semantics=("parallel", "arbitrary"),
                vmem_limit_bytes=VMEM_LIMIT_BYTES),
        )(x2, t2)

        sums = jnp.sum(partials, axis=(0, 2))      # (8,), rows 4..7 are zero
        pos_num, neg_num, pos_bce, neg_bce = sums[0], sums[1], sums[2], sums[3]

    if tail:
        x_t = lax.slice(log_p, (rows * LANES,), (total,)).astype(jnp.float32)
        t_t = lax.slice(tgt, (rows * LANES,), (total,))
        pos_t = (t_t == 1).astype(jnp.float32)
        neg_t = (t_t == 0).astype(jnp.float32)
        sp_t = jnp.maximum(x_t, 0.0) + jnp.log1p(jnp.exp(-jnp.abs(x_t)))
        pos_num = pos_num + jnp.sum(pos_t)
        neg_num = neg_num + jnp.sum(neg_t)
        pos_bce = pos_bce + jnp.sum(pos_t * (sp_t - x_t))
        neg_bce = neg_bce + jnp.sum(neg_t * sp_t)

    sum_num = pos_num + neg_num
    # TODO(synk): like the PyTorch code, this is NaN/Inf if the target has no 0/1 pixels.
    loss = (neg_num / sum_num) * pos_bce + (pos_num / sum_num) * neg_bce
    return jnp.float32(coeff_bce) * loss / total


def _reference_loss(bd_pre, bd_gt, coeff_bce=20.0):
    """Pure-JAX reference mirroring the PyTorch code."""
    log_p = jnp.transpose(bd_pre, (0, 2, 3, 1)).reshape(-1).astype(jnp.float32)
    t = bd_gt.reshape(-1).astype(jnp.float32)
    pos = t == 1.0
    neg = t == 0.0
    pos_num = jnp.sum(pos)
    neg_num = jnp.sum(neg)
    sum_num = pos_num + neg_num
    wgt = jnp.where(pos, neg_num / sum_num, 0.0) + jnp.where(neg, pos_num / sum_num, 0.0)
    l = jnp.maximum(log_p, 0.0) - log_p * t + jnp.log1p(jnp.exp(-jnp.abs(log_p)))
    return coeff_bce * jnp.mean(wgt * l)


if __name__ == "__main__":
    key = jax.random.PRNGKey(0)
    k1, k2 = jax.random.split(key)

    # small shapes consistent with the module: boundary logits (N,1,H,W), gt (N,H,W)
    n, c, h, w = 2, 1, 16, 16
    bd_pre = jax.random.normal(k1, (n, c, h, w), dtype=jnp.float32)
    bd_gt = (jax.random.uniform(k2, (n, h, w)) > 0.7).astype(jnp.float32)

    loss = boundary_loss(bd_pre, bd_gt, coeff_bce=20.0)
    loss = jax.block_until_ready(loss)

    ref = _reference_loss(bd_pre, bd_gt, coeff_bce=20.0)
    assert jnp.allclose(loss, ref, rtol=1e-5, atol=1e-5), (loss, ref)

    print("KERNEL_OK")
</pallas_src>

<mosaic_0001>
module attributes {stable_mosaic.version = 11 : i64} {
  func.func @_boundary_loss_kernel(%arg0: i32, %arg1: i32, %arg2: memref<4x128xf32, #tpu.memory_space<vmem>>, %arg3: memref<4x128xf32, #tpu.memory_space<vmem>>, %arg4: memref<1x8x128xf32, #tpu.memory_space<vmem>>, %arg5: memref<8x128xf32, #tpu.memory_space<vmem>>) attributes {dimension_semantics = [#tpu.dimension_semantics<parallel>, #tpu.dimension_semantics<arbitrary>], iteration_bounds = array<i64: 1, 1>, scalar_prefetch = 0 : i64, scratch_operands = 1 : i64, tpu.core_type = #tpu.core_type<tc>, window_params = [{transform_indices = @transform_0, window_bounds = array<i64: 4, 128>}, {transform_indices = @transform_1, window_bounds = array<i64: 4, 128>}, {transform_indices = @transform_2, window_bounds = array<i64: 1, 8, 128>}]} {
    %c0_i32 = arith.constant 0 : i32
    %0 = arith.cmpi eq, %arg1, %c0_i32 : i32
    %1 = arith.extui %0 : i1 to i32
    %c0_i32_0 = arith.constant 0 : i32
    %2 = arith.cmpi ne, %1, %c0_i32_0 : i32
    scf.if %2 {
      %cst_26 = arith.constant 0.000000e+00 : f32
      %47 = vector.broadcast %cst_26 : f32 to vector<8x128xf32>
      %c0_27 = arith.constant 0 : index
      %c0_28 = arith.constant 0 : index
      %48 = vector.load %arg5[%c0_27, %c0_28] : memref<8x128xf32, #tpu.memory_space<vmem>>, vector<8x128xf32>
      tpu.vector_store %arg5[%c0_27, %c0_28], %47 {strides = array<i32>} : memref<8x128xf32, #tpu.memory_space<vmem>>, vector<8x128xf32>,
    } else {
    }
    %c0 = arith.constant 0 : index
    %c0_1 = arith.constant 0 : index
    %3 = vector.load %arg2[%c0, %c0_1] : memref<4x128xf32, #tpu.memory_space<vmem>>, vector<4x128xf32>
    %c0_2 = arith.constant 0 : index
    %c0_3 = arith.constant 0 : index
    %4 = vector.load %arg3[%c0_2, %c0_3] : memref<4x128xf32, #tpu.memory_space<vmem>>, vector<4x128xf32>
    %cst = arith.constant 1.000000e+00 : f32
    %5 = vector.broadcast %cst : f32 to vector<4x128xf32>
    %6 = arith.cmpf oeq, %4, %5 : vector<4x128xf32>
    %cst_4 = arith.constant 0.000000e+00 : f32
    %7 = vector.broadcast %cst_4 : f32 to vector<4x128xf32>
    %8 = arith.cmpf oeq, %4, %7 : vector<4x128xf32>
    %9 = arith.extui %6 : vector<4x128xi1> to vector<4x128xi32>
    %10 = arith.sitofp %9 : vector<4x128xi32> to vector<4x128xf32>
    %11 = arith.extui %8 : vector<4x128xi1> to vector<4x128xi32>
    %12 = arith.sitofp %11 : vector<4x128xi32> to vector<4x128xf32>
    %cst_5 = arith.constant 0.000000e+00 : f32
    %13 = vector.broadcast %cst_5 : f32 to vector<4x128xf32>
    %14 = arith.maximumf %3, %13 : vector<4x128xf32>
    %15 = math.absf %3 : vector<4x128xf32>
    %cst_6 = arith.constant 0.000000e+00 : f32
    %16 = vector.broadcast %cst_6 : f32 to vector<4x128xf32>
    %17 = arith.subf %16, %15 : vector<4x128xf32>
    %18 = math.exp %17 : vector<4x128xf32>
    %19 = math.log1p %18 : vector<4x128xf32>
    %20 = arith.addf %14, %19 : vector<4x128xf32>
    %c0_7 = arith.constant 0 : index
    %c0_8 = arith.constant 0 : index
    %21 = vector.load %arg5[%c0_7, %c0_8] : memref<8x128xf32, #tpu.memory_space<vmem>>, vector<1x128xf32>
    %cst_9 = arith.constant dense<0.000000e+00> : vector<128xf32>
    %22 = vector.multi_reduction <add>, %10, %cst_9 [0] : vector<4x128xf32> to vector<128xf32>
    %23 = vector.shape_cast %22 : vector<128xf32> to vector<1x128xf32>
    %24 = arith.addf %21, %23 : vector<1x128xf32>
    %c0_10 = arith.constant 0 : index
    %c0_11 = arith.constant 0 : index
    %25 = vector.load %arg5[%c0_10, %c0_11] : memref<8x128xf32, #tpu.memory_space<vmem>>, vector<1x128xf32>
    tpu.vector_store %arg5[%c0_10, %c0_11], %24 {strides = array<i32>} : memref<8x128xf32, #tpu.memory_space<vmem>>, vector<1x128xf32>,
    %c1 = arith.constant 1 : index
    %c0_12 = arith.constant 0 : index
    %26 = vector.load %arg5[%c1, %c0_12] : memref<8x128xf32, #tpu.memory_space<vmem>>, vector<1x128xf32>
    %cst_13 = arith.constant dense<0.000000e+00> : vector<128xf32>
    %27 = vector.multi_reduction <add>, %12, %cst_13 [0] : vector<4x128xf32> to vector<128xf32>
    %28 = vector.shape_cast %27 : vector<128xf32> to vector<1x128xf32>
    %29 = arith.addf %26, %28 : vector<1x128xf32>
    %c1_14 = arith.constant 1 : index
    %c0_15 = arith.constant 0 : index
    %30 = vector.load %arg5[%c1_14, %c0_15] : memref<8x128xf32, #tpu.memory_space<vmem>>, vector<1x128xf32>
    tpu.vector_store %arg5[%c1_14, %c0_15], %29 {strides = array<i32>} : memref<8x128xf32, #tpu.memory_space<vmem>>, vector<1x128xf32>,
    %c2 = arith.constant 2 : index
    %c0_16 = arith.constant 0 : index
    %31 = vector.load %arg5[%c2, %c0_16] : memref<8x128xf32, #tpu.memory_space<vmem>>, vector<1x128xf32>
    %32 = arith.subf %20, %3 : vector<4x128xf32>
    %33 = arith.mulf %10, %32 : vector<4x128xf32>
    %cst_17 = arith.constant dense<0.000000e+00> : vector<128xf32>
    %34 = vector.multi_reduction <add>, %33, %cst_17 [0] : vector<4x128xf32> to vector<128xf32>
    %35 = vector.shape_cast %34 : vector<128xf32> to vector<1x128xf32>
    %36 = arith.addf %31, %35 : vector<1x128xf32>
    %c2_18 = arith.constant 2 : index
    %c0_19 = arith.constant 0 : index
    %37 = vector.load %arg5[%c2_18, %c0_19] : memref<8x128xf32, #tpu.memory_space<vmem>>, vector<1x128xf32>
    tpu.vector_store %arg5[%c2_18, %c0_19], %36 {strides = array<i32>} : memref<8x128xf32, #tpu.memory_space<vmem>>, vector<1x128xf32>,
    %c3 = arith.constant 3 : index
    %c0_20 = arith.constant 0 : index
    %38 = vector.load %arg5[%c3, %c0_20] : memref<8x128xf32, #tpu.memory_space<vmem>>, vector<1x128xf32>
    %39 = arith.mulf %12, %20 : vector<4x128xf32>
    %cst_21 = arith.constant dense<0.000000e+00> : vector<128xf32>
    %40 = vector.multi_reduction <add>, %39, %cst_21 [0] : vector<4x128xf32> to vector<128xf32>
    %41 = vector.shape_cast %40 : vector<128xf32> to vector<1x128xf32>
    %42 = arith.addf %38, %41 : vector<1x128xf32>
    %c3_22 = arith.constant 3 : index
    %c0_23 = arith.constant 0 : index
    %43 = vector.load %arg5[%c3_22, %c0_23] : memref<8x128xf32, #tpu.memory_space<vmem>>, vector<1x128xf32>
    tpu.vector_store %arg5[%c3_22, %c0_23], %42 {strides = array<i32>} : memref<8x128xf32, #tpu.memory_space<vmem>>, vector<1x128xf32>,
    %c0_i32_24 = arith.constant 0 : i32
    %44 = arith.cmpi eq, %arg1, %c0_i32_24 : i32
    %45 = arith.extui %44 : i1 to i32
    %c0_i32_25 = arith.constant 0 : i32
    %46 = arith.cmpi ne, %45, %c0_i32_25 : i32
    scf.if %46 {
      %c0_26 = arith.constant 0 : index
      %c0_27 = arith.constant 0 : index
      %47 = vector.load %arg5[%c0_26, %c0_27] : memref<8x128xf32, #tpu.memory_space<vmem>>, vector<8x128xf32>
      %c0_28 = arith.constant 0 : index
      %c0_29 = arith.constant 0 : index
      %c0_30 = arith.constant 0 : index
      %48 = vector.load %arg4[%c0_28, %c0_29, %c0_30] : memref<1x8x128xf32, #tpu.memory_space<vmem>>, vector<1x8x128xf32>
      %49 = vector.shape_cast %48 : vector<1x8x128xf32> to vector<8x128xf32>
      %50 = vector.shape_cast %47 : vector<8x128xf32> to vector<1x8x128xf32>
      tpu.vector_store %arg4[%c0_28, %c0_29, %c0_30], %50 {strides = array<i32>} : memref<1x8x128xf32, #tpu.memory_space<vmem>>, vector<1x8x128xf32>,
    } else {
    }
    return
  }
  func.func @transform_0(%arg0: i32, %arg1: i32) -> (i32, i32) {
    %c1_i32 = arith.constant 1 : i32
    %0 = arith.muli %arg0, %c1_i32 : i32
    %1 = arith.addi %0, %arg1 : i32
    %c0_i32 = arith.constant 0 : i32
    %c0_i32_0 = arith.constant 0 : i32
    return %1, %c0_i32 : i32, i32
  }
  func.func @transform_1(%arg0: i32, %arg1: i32) -> (i32, i32) {
    %c1_i32 = arith.constant 1 : i32
    %0 = arith.muli %arg0, %c1_i32 : i32
    %1 = arith.addi %0, %arg1 : i32
    %c0_i32 = arith.constant 0 : i32
    %c0_i32_0 = arith.constant 0 : i32
    return %1, %c0_i32 : i32, i32
  }
  func.func @transform_2(%arg0: i32, %arg1: i32) -> (i32, i32, i32) {
    %c0_i32 = arith.constant 0 : i32
    %c0_i32_0 = arith.constant 0 : i32
    %c0_i32_1 = arith.constant 0 : i32
    return %arg0, %c0_i32, %c0_i32_0 : i32, i32, i32
  }
}

</mosaic_0001>

<llo_original>
// kernel: tpu_custom_call.1
$region0: #{tpu_custom_call.1}
  #allocation0 [shape = 'u32[]', space=smem, size = 0x4, offset = 0x4, fixed_abs, tag = 'smem constant byte address 0x4 - core index']
  #allocation1 [shape = 'u32[144,128]{1,0:T(1,128)}', space=vmem, size = 0x12000, scoped, tag = 'internal scratch']
  #allocation2 [shape = 'f32[8,128]{1,0:T(8,128)}', space=vmem, size = 0x1000, scoped, tag = 'scratch operand']
  %s0 = inlined_call_operand.hbm [shape: f32[4,128], index: 0, kind: input, shape index: {}]
  %s1 = inlined_call_operand.hbm [shape: f32[4,128], index: 1, kind: input, shape index: {}]
  %s2 = inlined_call_operand.hbm [shape: f32[1,8,128], index: 2, kind: output, shape index: {}]
  %s3 = sld [smem:[#allocation0]]
  $region34: #{tpu_custom_call.1} parent=0
    _
  %s5 = ssub.s32 1, %s3
  %s6 = scalar_select 0, %s5, %s3
  $region1: #{tpu_custom_call.1} parent=0
    #allocation3 [shape = 'u8[2048]{0}', space=vmem, size = 0x800, scoped, tag = 'input window, operand 0, single buffered']
    #allocation4 [shape = 's32[1]{0}', space=sflag, size = 0x4, scoped, tag = 'scoped memory for tpu_custom_call.1']
    #allocation5 [shape = 's32[1]{0}', space=sflag, size = 0x4, scoped, tag = 'scoped memory for tpu_custom_call.1']
    #allocation6 [shape = 'u8[2048]{0}', space=vmem, size = 0x800, scoped, tag = 'input window, operand 1, single buffered']
    #allocation7 [shape = 's32[1]{0}', space=sflag, size = 0x4, scoped, tag = 'scoped memory for tpu_custom_call.1']
    #allocation8 [shape = 'u8[4096]{0}', space=vmem, size = 0x1000, scoped, tag = 'output window, operand 0, single buffered']
    %7 = vsyncpa [#allocation4], 0
    %8 = vsyncpa [#allocation7], 0
    %9 = vsyncpa [#allocation5], 0
    // Predicated region
    $region2: #{tpu_custom_call.1} parent=1 // pred_check
      _
    $region3: #{tpu_custom_call.1} parent=1 // pred_check_branch
      %11 = sbr.rel (0) target = $region5
    $region4: #{tpu_custom_call.1} parent=1 // pred_region
      %s12 = sadd.s32 0, 0
      %s14 = ssub.s32 64, 64
      %15 = vsyncadd [#allocation4], %s14
      %s16 = smul.addr %s12, 64
      %s17 = scalar_lea.hbm %s0, %s16
      %s19 = sshll.u32 [#allocation3], 4
      %s20 = int_to_ptr.vmem [resolvable:$true] %s19
      %22 = dma.hbm_to_vmem [thread:$0]  %s17, 64, %s20, [#allocation4]
    $region5: #{tpu_custom_call.1} parent=1 // pred_fallthru
      _
    // Predicated region
    $region6: #{tpu_custom_call.1} parent=1 // pred_check
      _
    $region7: #{tpu_custom_call.1} parent=1 // pred_check_branch
      %24 = sbr.rel (0) target = $region9
    $region8: #{tpu_custom_call.1} parent=1 // pred_region
      %s25 = sadd.s32 0, 0
      %s27 = ssub.s32 64, 64
      %28 = vsyncadd [#allocation7], %s27
      %s29 = smul.addr %s25, 64
      %s30 = scalar_lea.hbm %s1, %s29
      %s32 = sshll.u32 [#allocation6], 4
      %s33 = int_to_ptr.vmem [resolvable:$true] %s32
      %35 = dma.hbm_to_vmem [thread:$0]  %s30, 64, %s33, [#allocation7]
    $region9: #{tpu_custom_call.1} parent=1 // pred_fallthru
      _
    // Predicated region
    $region10: #{tpu_custom_call.1} parent=1 // pred_check
      _
    $region11: #{tpu_custom_call.1} parent=1 // pred_check_branch
      %37 = sbr.rel (0) target = $region13
    $region12: #{tpu_custom_call.1} parent=1 // pred_region
      %38 = dma.done [#allocation4], 64
    $region13: #{tpu_custom_call.1} parent=1 // pred_fallthru
      _
    // Predicated region
    $region14: #{tpu_custom_call.1} parent=1 // pred_check
      _
    $region15: #{tpu_custom_call.1} parent=1 // pred_check_branch
      %40 = sbr.rel (0) target = $region17
    $region16: #{tpu_custom_call.1} parent=1 // pred_region
      %41 = dma.done [#allocation7], 64
    $region17: #{tpu_custom_call.1} parent=1 // pred_fallthru
      _
    %s42 = sadd.s32 0, 0
    %s43 = sadd.s32 0, 0
    %p44 = scmp.eq.s32.totalorder 0, 0
    // Predicated region
    $region18: #{tpu_custom_call.1} parent=1 // pred_check
      %p45 = pneg %p44
    $region19: #{tpu_custom_call.1} parent=1 // pred_check_branch
      %47 = sbr.rel (%p45) target = $region21
    $region20: #{tpu_custom_call.1} parent=1 // pred_region
      %48 = vst [vmem:[#allocation2] sm:$0xff] 0.0
    $region21: #{tpu_custom_call.1} parent=1 // pred_fallthru
      _
    %v49 = vld [vmem:[#allocation3] sm:$0xf]
    %v50 = vld [vmem:[#allocation6] sm:$0xf]
    %vm51 = vcmp.eq.f32.partialorder %v50, 1.0
    %vm52 = vcmp.eq.f32.partialorder %v50, 0.0
    %v53 = vsel %vm51, 1, 0
    %v54 = vcvt.s32.f32 %v53
    %v55 = vsel %vm52, 1, 0
    %v56 = vcvt.s32.f32 %v55
    %v57 = vmax.f32 %v49, 0.0
    %v58 = vand.u32 2147483647, %v49
    %v59 = vsub.f32 0.0, %v58
    %v60 = vmul.f32 %v59, 1.442695
    %v61 = vpow.pop %v60
    %v62 = vadd.f32 %v61, 1.0
    %v63 = vlog2.pop %v62
    %v64 = vmul.f32 %v63, 0.6931472
    %v65 = vmul.f32 -0.5, %v61
    %v66 = vadd.f32 %v65, 1.0
    %v67 = vmul.f32 %v66, %v61
    %v68 = vand.u32 2147483647, %v61
    %vm69 = vcmp.lt.f32.partialorder %v68, 0.0004427343
    %v70 = vsel %vm69, %v67, %v64
    %v71 = vadd.f32 %v57, %v70
    %v72 = vld [vmem:[#allocation2] sm:$0x1]
    %vm73 = vcmask 1043456
    %v74 = vsel %vm73, %v54, 0.0
    %v75 = vrot.slane %v74, 4
    %v76 = vadd.f32 %v74, %v75
    %v77 = vrot.slane %v76, 2
    %v78 = vadd.f32 %v76, %v77
    %v79 = vrot.slane %v78, 1
    %v80 = vadd.f32 %v78, %v79
    %v81 = vadd.f32 %v72, %v80
    %82 = vst [vmem:[#allocation2] sm:$0x1] %v81
    %v83 = vld [vmem:[#allocation2 + $0x1] sm:$0x1]
    %v84 = vsel %vm73, %v56, 0.0
    %v85 = vrot.slane %v84, 4
    %v86 = vadd.f32 %v84, %v85
    %v87 = vrot.slane %v86, 2
    %v88 = vadd.f32 %v86, %v87
    %v89 = vrot.slane %v88, 1
    %v90 = vadd.f32 %v88, %v89
    %v91 = vadd.f32 %v83, %v90
    %92 = vst [vmem:[#allocation2 + $0x1] sm:$0x1] %v91
    %v93 = vld [vmem:[#allocation2 + $0x2] sm:$0x1]
    %v94 = vsub.f32 %v71, %v49
    %v95 = vmul.f32 %v54, %v94
    %v96 = vsel %vm73, %v95, 0.0
    %v97 = vrot.slane %v96, 4
    %v98 = vadd.f32 %v96, %v97
    %v99 = vrot.slane %v98, 2
    %v100 = vadd.f32 %v98, %v99
    %v101 = vrot.slane %v100, 1
    %v102 = vadd.f32 %v100, %v101
    %v103 = vadd.f32 %v93, %v102
    %104 = vst [vmem:[#allocation2 + $0x2] sm:$0x1] %v103
    %v105 = vld [vmem:[#allocation2 + $0x3] sm:$0x1]
    %v106 = vmul.f32 %v56, %v71
    %v107 = vsel %vm73, %v106, 0.0
    %v108 = vrot.slane %v107, 4
    %v109 = vadd.f32 %v107, %v108
    %v110 = vrot.slane %v109, 2
    %v111 = vadd.f32 %v109, %v110
    %v112 = vrot.slane %v111, 1
    %v113 = vadd.f32 %v111, %v112
    %v114 = vadd.f32 %v105, %v113
    %115 = vst [vmem:[#allocation2 + $0x3] sm:$0x1] %v114
    // Predicated region
    $region22: #{tpu_custom_call.1} parent=1 // pred_check
      %p116 = pneg %p44
    $region23: #{tpu_custom_call.1} parent=1 // pred_check_branch
      %118 = sbr.rel (%p116) target = $region25
    $region24: #{tpu_custom_call.1} parent=1 // pred_region
      %v119 = vld [vmem:[#allocation2] sm:$0xff]
      %120 = vst [vmem:[#allocation8] sm:$0xff] %v119
    $region25: #{tpu_custom_call.1} parent=1 // pred_fallthru
      _
    // Predicated region
    $region26: #{tpu_custom_call.1} parent=1 // pred_check
      _
    $region27: #{tpu_custom_call.1} parent=1 // pred_check_branch
      %122 = sbr.rel (0) target = $region29
    $region28: #{tpu_custom_call.1} parent=1 // pred_region
      %s124 = ssub.s32 128, 128
      %125 = vsyncadd [#allocation5], %s124
      %s127 = sshll.u32 [#allocation8], 4
      %s128 = int_to_ptr.vmem [resolvable:$true] %s127
      %130 = dma.vmem_to_hbm [thread:$0]  %s128, 128, %s2, [#allocation5]
    $region29: #{tpu_custom_call.1} parent=1 // pred_fallthru
      _
    // Predicated region
    $region30: #{tpu_custom_call.1} parent=1 // pred_check
      _
    $region31: #{tpu_custom_call.1} parent=1 // pred_check_branch
      %132 = sbr.rel (0) target = $region33
    $region32: #{tpu_custom_call.1} parent=1 // pred_region
      %133 = dma.done [#allocation5], 128
    $region33: #{tpu_custom_call.1} parent=1 // pred_fallthru
      _
    %134 = vsyncpa [#allocation4], 1
    %135 = vsyncpa [#allocation7], 1
    %136 = vsyncpa [#allocation5], 1

</llo_original>
